<compile_context>
chip_gen: v7x
topology: tpu7x:2x2x1
jax: 0.10.0
libtpu: 0.0.40
codegen_flags: <defaults>
</compile_context>

<pallas_src>
import functools

import jax
import jax.numpy as jnp
from jax.experimental import pallas as pl
from jax.experimental.pallas import tpu as pltpu

_LANE = 128


def _gaussian_mlp_kernel(n_layers, n_x, slope, d_out, *refs):
    """Fused transposed forward of the packed (mean | log_var) MLP.

    refs layout (all blocks, batch on the 128-lane axis):
      refs[0 : n_x]             x pieces       bf16 [d_j, B_TILE]
      refs[n_x : 2*n_x + 1]     layer 0        W0_j bf16 [w0_out, d_j], b0 f32 [w0_out, 1]
      then per layer l >= 1     W_l bf16 [out_l, in_l], b_l f32 [out_l, 1]
      refs[-1]                  packed output  f32 [2*d_out, B_TILE]  (mean rows | var rows)
    """
    out_ref = refs[-1]
    x_refs = refs[:n_x]
    p = n_x

    # layer 0: h = sum_j W0_j @ x_j + b0   (fuses the dim=1 concat of forward(*input))
    h = jnp.dot(refs[p][...], x_refs[0][...], preferred_element_type=jnp.float32)
    for j in range(1, n_x):
        h = h + jnp.dot(refs[p + j][...], x_refs[j][...],
                        preferred_element_type=jnp.float32)
    h = h + refs[p + n_x][...]
    p += n_x + 1

    for _ in range(1, n_layers):
        # leaky relu in f32 on the VPU, then one bf16 pack for the next MXU op
        h = jnp.where(h > 0, h, slope * h).astype(jnp.bfloat16)
        w = refs[p][...]
        b = refs[p + 1][...]
        p += 2
        h = jnp.dot(w, h, preferred_element_type=jnp.float32) + b

    # h: [2*d_out, B_TILE] f32; rows [0, d_out) = mean, [d_out, 2*d_out) = log_var.
    # d_out is a sublane multiple -> the row slice is free; exp (EUP) only on
    # the log-var half, mean half passes through untouched.
    out_ref[...] = jnp.concatenate([h[:d_out, :], jnp.exp(h[d_out:, :])], axis=0)


def fuse_gaussian_mlp_params(mean_params, logvar_params, input_split=None):
    """Pack the mean / log_var head MLPs into ONE transposed MLP (built once).

    Per layer returns (w_pieces, b):
      w_pieces : tuple of bf16 weights [fused_out, in_piece], pre-transposed so
                 the kernel computes h = W @ x with batch on the lane axis.
                 Layer 0 is a row-concat [Wm; Wl] and, if `input_split` is
                 given, split along its input axis so the x1|x2 concat of
                 GaussianMLP.forward fuses into the kernel.  Later layers are
                 block-diagonal [[Wm, 0], [0, Wl]] (single piece).
      b        : f32 bias [fused_out, 1].
    Weights are cast to bf16 HERE (once), not per forward call.
    """
    assert len(mean_params) == len(logvar_params)
    fused = []
    for i, ((wm, bm), (wl, bl)) in enumerate(zip(mean_params, logvar_params)):
        wm_t, wl_t = wm.T, wl.T                       # [out, in]
        if i == 0:
            w_t = jnp.concatenate([wm_t, wl_t], axis=0)          # [2*out, in]
        else:
            z_tr = jnp.zeros((wm_t.shape[0], wl_t.shape[1]), wm.dtype)
            z_bl = jnp.zeros((wl_t.shape[0], wm_t.shape[1]), wl.dtype)
            w_t = jnp.concatenate(
                [jnp.concatenate([wm_t, z_tr], axis=1),
                 jnp.concatenate([z_bl, wl_t], axis=1)], axis=0)  # [2*out, 2*in]
        w_t = w_t.astype(jnp.bfloat16)
        if i == 0 and input_split is not None:
            pieces, off = [], 0
            for d in input_split:
                pieces.append(w_t[:, off:off + d])
                off += d
            assert off == w_t.shape[1]
            w_pieces = tuple(pieces)
        else:
            w_pieces = (w_t,)
        b = jnp.concatenate([bm, bl], axis=0).astype(jnp.float32).reshape(-1, 1)
        fused.append((w_pieces, b))
    return fused


def gaussian_mlp_forward(inputs, fused_params, d_out, slope=0.1, b_tile_max=4096):
    """inputs: tuple of [B, d_j] arrays (the *input of GaussianMLP.forward;
    concatenated along dim=1 INSIDE the kernel).  fused_params: from
    fuse_gaussian_mlp_params.  Returns (mean [B, d_out], var [B, d_out])."""
    inputs = tuple(inputs)
    n_x = len(inputs)
    n_layers = len(fused_params)
    batch = inputs[0].shape[0]
    assert all(xj.shape[0] == batch for xj in inputs)
    assert len(fused_params[0][0]) == n_x
    for xj, w0j in zip(inputs, fused_params[0][0]):
        assert int(w0j.shape[1]) == int(xj.shape[1])
    out_width = 2 * d_out

    # ---- batch tiling: batch on the 128-lane axis, balanced tiles, and a
    #      >=2-step grid when batch is large enough (v7x has 2 TensorCores).
    n_tiles = max(1, pl.cdiv(batch, b_tile_max))
    if batch > _LANE and n_tiles < 2:
        n_tiles = 2
    b_tile = _LANE * pl.cdiv(pl.cdiv(batch, n_tiles), _LANE)
    b_pad = n_tiles * b_tile

    # ---- transpose + single bf16 down-cast + pad each input piece:
    #      [B, d_j] -> bf16 [d_j, b_pad]   (layout plumbing outside the kernel).
    xs_t = []
    for xj in inputs:
        xt = xj.astype(jnp.bfloat16).T
        if b_pad != batch:
            xt = jnp.pad(xt, ((0, 0), (0, b_pad - batch)))
        xs_t.append(xt)

    flat_args, in_specs = [], []
    for xt in xs_t:
        flat_args.append(xt)
        in_specs.append(pl.BlockSpec((xt.shape[0], b_tile), lambda i: (0, i)))
    for w_pieces, b in fused_params:
        for w in w_pieces:
            flat_args.append(w)
            # Same block index every grid step -> stays VMEM-resident.
            in_specs.append(pl.BlockSpec(w.shape, lambda i: (0, 0)))
        flat_args.append(b)
        in_specs.append(pl.BlockSpec(b.shape, lambda i: (0, 0)))

    # ---- cost estimate (helps XLA schedule the surrounding graph).
    w_bytes = sum(sum(int(w.size) * w.dtype.itemsize for w in wp)
                  + int(b.size) * b.dtype.itemsize for wp, b in fused_params)
    flops = 2 * b_pad * sum(sum(int(w.shape[0]) * int(w.shape[1]) for w in wp)
                            for wp, _ in fused_params)
    bytes_accessed = (sum(int(x.size) * x.dtype.itemsize for x in xs_t)
                      + w_bytes + b_pad * out_width * 4)
    cost = pl.CostEstimate(flops=flops, transcendentals=b_pad * d_out,
                           bytes_accessed=bytes_accessed)

    # ---- per-step VMEM footprint; only raise the scoped limit when needed
    #      (v7x has 64 MiB physical VMEM vs 128 MiB on v5e/v6e).
    max_width = max(int(b.shape[0]) for _, b in fused_params)
    x_blk = sum(int(x.shape[0]) * b_tile * 2 for x in xs_t)        # bf16 inputs
    out_blk = out_width * b_tile * 4                               # f32 output
    act_blk = max_width * b_tile * (4 + 2)                         # f32 + bf16 h
    vmem_est = 2 * (x_blk + out_blk) + w_bytes + 2 * act_blk
    vmem_limit = (int(min(1.5 * vmem_est, 60 * 1024 * 1024))
                  if vmem_est > 24 * 1024 * 1024 else None)

    kernel = functools.partial(_gaussian_mlp_kernel, n_layers, n_x, slope, d_out)
    packed = pl.pallas_call(
        kernel,
        out_shape=jax.ShapeDtypeStruct((out_width, b_pad), jnp.float32),
        grid=(n_tiles,),
        in_specs=in_specs,
        out_specs=pl.BlockSpec((out_width, b_tile), lambda i: (0, i)),
        compiler_params=pltpu.CompilerParams(
            dimension_semantics=("parallel",),
            vmem_limit_bytes=vmem_limit),
        cost_estimate=cost,
    )(*flat_args)

    mean = packed[:d_out, :batch].T
    var = packed[d_out:, :batch].T
    return mean, var


def _init_mlp_params(key, dims):
    """Deterministic nn.Linear-style init: U(-1/sqrt(fan_in), 1/sqrt(fan_in)).
    Stored input-major: W [in, out], b [out]."""
    params = []
    for d_in, d_out in zip(dims[:-1], dims[1:]):
        key, kw, kb = jax.random.split(key, 3)
        bound = 1.0 / jnp.sqrt(jnp.float32(d_in))
        w = jax.random.uniform(kw, (d_in, d_out), jnp.float32, -bound, bound)
        b = jax.random.uniform(kb, (d_out,), jnp.float32, -bound, bound)
        params.append((w, b))
    return params


def _reference_forward_f32(x, mean_params, logvar_params, slope=0.1):
    """Pure-JAX f32 reference matching the PyTorch GaussianMLP exactly."""
    def mlp(h, params):
        for i, (w, b) in enumerate(params):
            h = h @ w + b
            if i < len(params) - 1:
                h = jnp.where(h > 0, h, slope * h)
        return h
    return mlp(x, mean_params), jnp.exp(mlp(x, logvar_params))


def _reference_forward_mixed(x, mean_params, logvar_params, slope=0.1):
    """Pure-JAX reference with the same bf16-operand / f32-accumulate mixed
    precision as the kernel (tight numerical comparison)."""
    def mlp(h, params):
        h = h.astype(jnp.bfloat16)
        for i, (w, b) in enumerate(params):
            h = jnp.dot(h, w.astype(jnp.bfloat16),
                        preferred_element_type=jnp.float32) + b
            if i < len(params) - 1:
                h = jnp.where(h > 0, h, slope * h).astype(jnp.bfloat16)
        return h
    return mlp(x, mean_params), jnp.exp(mlp(x, logvar_params))


if __name__ == "__main__":
    # GaussianMLP(input_dim=16, output_dim=8, hidden_dim=32, n_layers=3,
    #             activation='lrelu', slope=0.1)
    input_dim, output_dim, hidden_dim, n_layers, slope = 16, 8, 32, 3, 0.1
    batch = 8

    key = jax.random.PRNGKey(0)
    k_x1, k_x2, k_mean, k_lvar = jax.random.split(key, 4)

    # forward(*input): two inputs concatenated along dim=1 (concat fused into kernel)
    x1 = jax.random.normal(k_x1, (batch, input_dim // 2), jnp.float32)
    x2 = jax.random.normal(k_x2, (batch, input_dim // 2), jnp.float32)

    dims = [input_dim] + [hidden_dim] * (n_layers - 1) + [output_dim]
    mean_params = _init_mlp_params(k_mean, dims)
    logvar_params = _init_mlp_params(k_lvar, dims)

    # Build the fused, transposed (mean | log_var) weights ONCE.
    fused_params = fuse_gaussian_mlp_params(
        mean_params, logvar_params, input_split=(x1.shape[1], x2.shape[1]))

    mean, var = gaussian_mlp_forward((x1, x2), fused_params, output_dim,
                                     slope=slope)
    jax.block_until_ready((mean, var))

    x = jnp.concatenate([x1, x2], axis=1)
    mean_mx, var_mx = _reference_forward_mixed(x, mean_params, logvar_params, slope)
    mean_f32, var_f32 = _reference_forward_f32(x, mean_params, logvar_params, slope)

    assert mean.shape == (batch, output_dim) and var.shape == (batch, output_dim)
    # Tight check vs the same-precision reference (kernel math correctness).
    assert jnp.allclose(mean, mean_mx, atol=5e-3, rtol=5e-3)
    assert jnp.allclose(var, var_mx, atol=5e-3, rtol=5e-3)
    # Loose drift check vs the true f32 GaussianMLP (bf16 MXU operands).
    assert jnp.allclose(mean, mean_f32, atol=5e-2, rtol=5e-2)
    assert jnp.allclose(var, var_f32, atol=5e-2, rtol=5e-2)

    print("KERNEL_OK")
</pallas_src>

<mosaic_0001>
module attributes {stable_mosaic.version = 11 : i64} {
  func.func @_gaussian_mlp_kernel(%arg0: i32, %arg1: memref<8x128xbf16, #tpu.memory_space<vmem>>, %arg2: memref<8x128xbf16, #tpu.memory_space<vmem>>, %arg3: memref<64x8xbf16, #tpu.memory_space<vmem>>, %arg4: memref<64x8xbf16, #tpu.memory_space<vmem>>, %arg5: memref<64x1xf32, #tpu.memory_space<vmem>>, %arg6: memref<64x64xbf16, #tpu.memory_space<vmem>>, %arg7: memref<64x1xf32, #tpu.memory_space<vmem>>, %arg8: memref<16x64xbf16, #tpu.memory_space<vmem>>, %arg9: memref<16x1xf32, #tpu.memory_space<vmem>>, %arg10: memref<16x128xf32, #tpu.memory_space<vmem>>) attributes {dimension_semantics = [#tpu.dimension_semantics<parallel>], iteration_bounds = array<i64: 1>, scalar_prefetch = 0 : i64, scratch_operands = 0 : i64, tpu.core_type = #tpu.core_type<tc>, window_params = [{transform_indices = @transform_0, window_bounds = array<i64: 8, 128>}, {transform_indices = @transform_1, window_bounds = array<i64: 8, 128>}, {pipeline_mode = #tpu.pipeline_mode<synchronous>, transform_indices = @transform_2, window_bounds = array<i64: 64, 8>}, {pipeline_mode = #tpu.pipeline_mode<synchronous>, transform_indices = @transform_3, window_bounds = array<i64: 64, 8>}, {pipeline_mode = #tpu.pipeline_mode<synchronous>, transform_indices = @transform_4, window_bounds = array<i64: 64, 1>}, {pipeline_mode = #tpu.pipeline_mode<synchronous>, transform_indices = @transform_5, window_bounds = array<i64: 64, 64>}, {pipeline_mode = #tpu.pipeline_mode<synchronous>, transform_indices = @transform_6, window_bounds = array<i64: 64, 1>}, {pipeline_mode = #tpu.pipeline_mode<synchronous>, transform_indices = @transform_7, window_bounds = array<i64: 16, 64>}, {pipeline_mode = #tpu.pipeline_mode<synchronous>, transform_indices = @transform_8, window_bounds = array<i64: 16, 1>}, {transform_indices = @transform_9, window_bounds = array<i64: 16, 128>}]} {
    %c0 = arith.constant 0 : index
    %c0_0 = arith.constant 0 : index
    %0 = vector.load %arg3[%c0, %c0_0] : memref<64x8xbf16, #tpu.memory_space<vmem>>, vector<64x8xbf16>
    %c0_1 = arith.constant 0 : index
    %c0_2 = arith.constant 0 : index
    %1 = vector.load %arg1[%c0_1, %c0_2] : memref<8x128xbf16, #tpu.memory_space<vmem>>, vector<8x128xbf16>
    %cst = arith.constant dense<0.000000e+00> : vector<64x128xf32>
    %2 = tpu.matmul %0, %1, %cst {dimension_numbers = #tpu.dot_dimension_numbers<[1], [0], [0], [1], [0, 0, 1, 1], [], []>} : vector<64x8xbf16>, vector<8x128xbf16>, vector<64x128xf32> -> vector<64x128xf32>
    %c0_3 = arith.constant 0 : index
    %c0_4 = arith.constant 0 : index
    %3 = vector.load %arg4[%c0_3, %c0_4] : memref<64x8xbf16, #tpu.memory_space<vmem>>, vector<64x8xbf16>
    %c0_5 = arith.constant 0 : index
    %c0_6 = arith.constant 0 : index
    %4 = vector.load %arg2[%c0_5, %c0_6] : memref<8x128xbf16, #tpu.memory_space<vmem>>, vector<8x128xbf16>
    %cst_7 = arith.constant dense<0.000000e+00> : vector<64x128xf32>
    %5 = tpu.matmul %3, %4, %cst_7 {dimension_numbers = #tpu.dot_dimension_numbers<[1], [0], [0], [1], [0, 0, 1, 1], [], []>} : vector<64x8xbf16>, vector<8x128xbf16>, vector<64x128xf32> -> vector<64x128xf32>
    %6 = arith.addf %2, %5 : vector<64x128xf32>
    %c0_8 = arith.constant 0 : index
    %c0_9 = arith.constant 0 : index
    %7 = vector.load %arg5[%c0_8, %c0_9] : memref<64x1xf32, #tpu.memory_space<vmem>>, vector<64x1xf32>
    %8 = vector.broadcast %7 : vector<64x1xf32> to vector<64x128xf32>
    %9 = arith.addf %6, %8 : vector<64x128xf32>
    %cst_10 = arith.constant 0.000000e+00 : f32
    %10 = vector.broadcast %cst_10 : f32 to vector<64x128xf32>
    %11 = arith.cmpf ogt, %9, %10 : vector<64x128xf32>
    %cst_11 = arith.constant 1.000000e-01 : f32
    %12 = vector.broadcast %cst_11 : f32 to vector<64x128xf32>
    %13 = arith.mulf %12, %9 : vector<64x128xf32>
    %14 = arith.select %11, %9, %13 : vector<64x128xi1>, vector<64x128xf32>
    %15 = arith.truncf %14 : vector<64x128xf32> to vector<64x128xbf16>
    %c0_12 = arith.constant 0 : index
    %c0_13 = arith.constant 0 : index
    %16 = vector.load %arg6[%c0_12, %c0_13] : memref<64x64xbf16, #tpu.memory_space<vmem>>, vector<64x64xbf16>
    %c0_14 = arith.constant 0 : index
    %c0_15 = arith.constant 0 : index
    %17 = vector.load %arg7[%c0_14, %c0_15] : memref<64x1xf32, #tpu.memory_space<vmem>>, vector<64x1xf32>
    %cst_16 = arith.constant dense<0.000000e+00> : vector<64x128xf32>
    %18 = tpu.matmul %16, %15, %cst_16 {dimension_numbers = #tpu.dot_dimension_numbers<[1], [0], [0], [1], [0, 0, 1, 1], [], []>} : vector<64x64xbf16>, vector<64x128xbf16>, vector<64x128xf32> -> vector<64x128xf32>
    %19 = vector.broadcast %17 : vector<64x1xf32> to vector<64x128xf32>
    %20 = arith.addf %18, %19 : vector<64x128xf32>
    %cst_17 = arith.constant 0.000000e+00 : f32
    %21 = vector.broadcast %cst_17 : f32 to vector<64x128xf32>
    %22 = arith.cmpf ogt, %20, %21 : vector<64x128xf32>
    %cst_18 = arith.constant 1.000000e-01 : f32
    %23 = vector.broadcast %cst_18 : f32 to vector<64x128xf32>
    %24 = arith.mulf %23, %20 : vector<64x128xf32>
    %25 = arith.select %22, %20, %24 : vector<64x128xi1>, vector<64x128xf32>
    %26 = arith.truncf %25 : vector<64x128xf32> to vector<64x128xbf16>
    %c0_19 = arith.constant 0 : index
    %c0_20 = arith.constant 0 : index
    %27 = vector.load %arg8[%c0_19, %c0_20] : memref<16x64xbf16, #tpu.memory_space<vmem>>, vector<16x64xbf16>
    %c0_21 = arith.constant 0 : index
    %c0_22 = arith.constant 0 : index
    %28 = vector.load %arg9[%c0_21, %c0_22] : memref<16x1xf32, #tpu.memory_space<vmem>>, vector<16x1xf32>
    %cst_23 = arith.constant dense<0.000000e+00> : vector<16x128xf32>
    %29 = tpu.matmul %27, %26, %cst_23 {dimension_numbers = #tpu.dot_dimension_numbers<[1], [0], [0], [1], [0, 0, 1, 1], [], []>} : vector<16x64xbf16>, vector<64x128xbf16>, vector<16x128xf32> -> vector<16x128xf32>
    %30 = vector.broadcast %28 : vector<16x1xf32> to vector<16x128xf32>
    %31 = arith.addf %29, %30 : vector<16x128xf32>
    %32 = vector.extract_strided_slice %31 {offsets = [0, 0], sizes = [8, 128], strides = [1, 1]} : vector<16x128xf32> to vector<8x128xf32>
    %33 = vector.extract_strided_slice %31 {offsets = [8, 0], sizes = [8, 128], strides = [1, 1]} : vector<16x128xf32> to vector<8x128xf32>
    %34 = math.exp %33 : vector<8x128xf32>
    %35 = tpu.concatenate %32, %34 in 0 : vector<8x128xf32>, vector<8x128xf32> -> vector<16x128xf32>
    %c0_24 = arith.constant 0 : index
    %c0_25 = arith.constant 0 : index
    %36 = vector.load %arg10[%c0_24, %c0_25] : memref<16x128xf32, #tpu.memory_space<vmem>>, vector<16x128xf32>
    tpu.vector_store %arg10[%c0_24, %c0_25], %35 {strides = array<i32>} : memref<16x128xf32, #tpu.memory_space<vmem>>, vector<16x128xf32>,
    return
  }
  func.func @transform_0(%arg0: i32) -> (i32, i32) {
    %c0_i32 = arith.constant 0 : i32
    %c0_i32_0 = arith.constant 0 : i32
    return %c0_i32, %arg0 : i32, i32
  }
  func.func @transform_1(%arg0: i32) -> (i32, i32) {
    %c0_i32 = arith.constant 0 : i32
    %c0_i32_0 = arith.constant 0 : i32
    return %c0_i32, %arg0 : i32, i32
  }
  func.func @transform_2(%arg0: i32) -> (i32, i32) {
    %c0_i32 = arith.constant 0 : i32
    %c0_i32_0 = arith.constant 0 : i32
    %c0_i32_1 = arith.constant 0 : i32
    return %c0_i32, %c0_i32_0 : i32, i32
  }
  func.func @transform_3(%arg0: i32) -> (i32, i32) {
    %c0_i32 = arith.constant 0 : i32
    %c0_i32_0 = arith.constant 0 : i32
    %c0_i32_1 = arith.constant 0 : i32
    return %c0_i32, %c0_i32_0 : i32, i32
  }
  func.func @transform_4(%arg0: i32) -> (i32, i32) {
    %c0_i32 = arith.constant 0 : i32
    %c0_i32_0 = arith.constant 0 : i32
    %c0_i32_1 = arith.constant 0 : i32
    return %c0_i32, %c0_i32_0 : i32, i32
  }
  func.func @transform_5(%arg0: i32) -> (i32, i32) {
    %c0_i32 = arith.constant 0 : i32
    %c0_i32_0 = arith.constant 0 : i32
    %c0_i32_1 = arith.constant 0 : i32
    return %c0_i32, %c0_i32_0 : i32, i32
  }
  func.func @transform_6(%arg0: i32) -> (i32, i32) {
    %c0_i32 = arith.constant 0 : i32
    %c0_i32_0 = arith.constant 0 : i32
    %c0_i32_1 = arith.constant 0 : i32
    return %c0_i32, %c0_i32_0 : i32, i32
  }
  func.func @transform_7(%arg0: i32) -> (i32, i32) {
    %c0_i32 = arith.constant 0 : i32
    %c0_i32_0 = arith.constant 0 : i32
    %c0_i32_1 = arith.constant 0 : i32
    return %c0_i32, %c0_i32_0 : i32, i32
  }
  func.func @transform_8(%arg0: i32) -> (i32, i32) {
    %c0_i32 = arith.constant 0 : i32
    %c0_i32_0 = arith.constant 0 : i32
    %c0_i32_1 = arith.constant 0 : i32
    return %c0_i32, %c0_i32_0 : i32, i32
  }
  func.func @transform_9(%arg0: i32) -> (i32, i32) {
    %c0_i32 = arith.constant 0 : i32
    %c0_i32_0 = arith.constant 0 : i32
    return %c0_i32, %arg0 : i32, i32
  }
}

</mosaic_0001>

<llo_original>
// kernel: tpu_custom_call.1
$region0: #{tpu_custom_call.1}
  #allocation0 [shape = 'u32[]', space=smem, size = 0x4, offset = 0x4, fixed_abs, tag = 'smem constant byte address 0x4 - core index']
  #allocation1 [shape = 'u32[144,128]{1,0:T(1,128)}', space=vmem, size = 0x12000, scoped, tag = 'internal scratch']
  %s0 = inlined_call_operand.vmem [shape: bf16[8,128], index: 0, kind: input, shape index: {}]
  %s1 = inlined_call_operand.vmem [shape: bf16[8,128], index: 1, kind: input, shape index: {}]
  %s2 = inlined_call_operand.vmem [shape: bf16[64,8], index: 2, kind: input, shape index: {}]
  %s3 = inlined_call_operand.vmem [shape: bf16[64,8], index: 3, kind: input, shape index: {}]
  %s4 = inlined_call_operand.vmem [shape: f32[64,1], index: 4, kind: input, shape index: {}]
  %s5 = inlined_call_operand.vmem [shape: bf16[64,64], index: 5, kind: input, shape index: {}]
  %s6 = inlined_call_operand.vmem [shape: f32[64,1], index: 6, kind: input, shape index: {}]
  %s7 = inlined_call_operand.vmem [shape: bf16[16,64], index: 7, kind: input, shape index: {}]
  %s8 = inlined_call_operand.vmem [shape: f32[16,1], index: 8, kind: input, shape index: {}]
  %s9 = inlined_call_operand.hbm [shape: f32[16,128], index: 9, kind: output, shape index: {}]
  %s10 = sld [smem:[#allocation0]]
  $region46: #{tpu_custom_call.1} parent=0
    _
  %s12 = ssub.s32 1, %s10
  %s13 = scalar_select 0, %s12, %s10
  $region1: #{tpu_custom_call.1} parent=0
    #allocation2 [shape = 'u8[8192]{0}', space=vmem, size = 0x2000, scoped, tag = 'output window, operand 0, single buffered']
    #allocation3 [shape = 's32[1]{0}', space=sflag, size = 0x4, scoped, tag = 'scoped memory for tpu_custom_call.1']
    %14 = vsyncpa [#allocation3], 0
    // Predicated region
    $region2: #{tpu_custom_call.1} parent=1 // pred_check
      _
    $region3: #{tpu_custom_call.1} parent=1 // pred_check_branch
      %16 = sbr.rel (0) target = $region5
    $region4: #{tpu_custom_call.1} parent=1 // pred_region
      _
    $region5: #{tpu_custom_call.1} parent=1 // pred_fallthru
      _
    // Predicated region
    $region6: #{tpu_custom_call.1} parent=1 // pred_check
      _
    $region7: #{tpu_custom_call.1} parent=1 // pred_check_branch
      %18 = sbr.rel (0) target = $region9
    $region8: #{tpu_custom_call.1} parent=1 // pred_region
      _
    $region9: #{tpu_custom_call.1} parent=1 // pred_fallthru
      _
    // Predicated region
    $region10: #{tpu_custom_call.1} parent=1 // pred_check
      _
    $region11: #{tpu_custom_call.1} parent=1 // pred_check_branch
      %20 = sbr.rel (0) target = $region13
    $region12: #{tpu_custom_call.1} parent=1 // pred_region
      _
    $region13: #{tpu_custom_call.1} parent=1 // pred_fallthru
      _
    // Predicated region
    $region14: #{tpu_custom_call.1} parent=1 // pred_check
      _
    $region15: #{tpu_custom_call.1} parent=1 // pred_check_branch
      %22 = sbr.rel (0) target = $region17
    $region16: #{tpu_custom_call.1} parent=1 // pred_region
      _
    $region17: #{tpu_custom_call.1} parent=1 // pred_fallthru
      _
    // Predicated region
    $region18: #{tpu_custom_call.1} parent=1 // pred_check
      _
    $region19: #{tpu_custom_call.1} parent=1 // pred_check_branch
      %24 = sbr.rel (0) target = $region21
    $region20: #{tpu_custom_call.1} parent=1 // pred_region
      _
    $region21: #{tpu_custom_call.1} parent=1 // pred_fallthru
      _
    // Predicated region
    $region22: #{tpu_custom_call.1} parent=1 // pred_check
      _
    $region23: #{tpu_custom_call.1} parent=1 // pred_check_branch
      %26 = sbr.rel (0) target = $region25
    $region24: #{tpu_custom_call.1} parent=1 // pred_region
      _
    $region25: #{tpu_custom_call.1} parent=1 // pred_fallthru
      _
    // Predicated region
    $region26: #{tpu_custom_call.1} parent=1 // pred_check
      _
    $region27: #{tpu_custom_call.1} parent=1 // pred_check_branch
      %28 = sbr.rel (0) target = $region29
    $region28: #{tpu_custom_call.1} parent=1 // pred_region
      _
    $region29: #{tpu_custom_call.1} parent=1 // pred_fallthru
      _
    // Predicated region
    $region30: #{tpu_custom_call.1} parent=1 // pred_check
      _
    $region31: #{tpu_custom_call.1} parent=1 // pred_check_branch
      %30 = sbr.rel (0) target = $region33
    $region32: #{tpu_custom_call.1} parent=1 // pred_region
      _
    $region33: #{tpu_custom_call.1} parent=1 // pred_fallthru
      _
    // Predicated region
    $region34: #{tpu_custom_call.1} parent=1 // pred_check
      _
    $region35: #{tpu_custom_call.1} parent=1 // pred_check_branch
      %32 = sbr.rel (0) target = $region37
    $region36: #{tpu_custom_call.1} parent=1 // pred_region
      _
    $region37: #{tpu_custom_call.1} parent=1 // pred_fallthru
      _
    %v34 = vld [vmem:[%s2] sm:$0xf]
    %v35 = vld [vmem:[%s2 + $0x4] sm:$0xf]
    %v36 = vld [vmem:[%s2 + $0x8] sm:$0xf]
    %v37 = vld [vmem:[%s2 + $0xc] sm:$0xf]
    %v38 = vld [vmem:[%s2 + $0x10] sm:$0xf]
    %v39 = vld [vmem:[%s2 + $0x14] sm:$0xf]
    %v40 = vld [vmem:[%s2 + $0x18] sm:$0xf]
    %v41 = vld [vmem:[%s2 + $0x1c] sm:$0xf]
    %v42 = vld [vmem:[%s0] sm:$0xf]
    %v43 = vld [vmem:[%s3] sm:$0xf]
    %v44 = vld [vmem:[%s3 + $0x4] sm:$0xf]
    %v45 = vld [vmem:[%s3 + $0x8] sm:$0xf]
    %v46 = vld [vmem:[%s3 + $0xc] sm:$0xf]
    %v47 = vld [vmem:[%s3 + $0x10] sm:$0xf]
    %v48 = vld [vmem:[%s3 + $0x14] sm:$0xf]
    %v49 = vld [vmem:[%s3 + $0x18] sm:$0xf]
    %v50 = vld [vmem:[%s3 + $0x1c] sm:$0xf]
    %v51 = vld [vmem:[%s1] sm:$0xf]
    %v60 = vunpack.c.l.b16 %v43
    %v61 = vunpack.c.l.b16 %v44
    %v62 = vunpack.c.l.b16 %v45
    %v63 = vunpack.c.l.b16 %v46
    %v64 = vunpack.c.l.b16 %v47
    %v65 = vunpack.c.l.b16 %v48
    %v66 = vunpack.c.l.b16 %v49
    %v67 = vunpack.c.l.b16 %v50
    %v68 = vpack.c.b16 %v61, %v60
    %v69 = vpack.c.b16 %v63, %v62
    %v70 = vpack.c.b16 %v65, %v64
    %v71 = vpack.c.b16 %v67, %v66
    %vm72 = vcmask 64512
    %v74 = vsel %vm72, %v68, 0
    %v77 = vsel %vm72, %v69, 0
    %v80 = vsel %vm72, %v70, 0
    %v83 = vsel %vm72, %v71, 0
    %vm85 = vcmask 1043456
    %v87 = vsel %vm85, %v51, 0
    %89 = vmatprep.subr.bf16.mxu0 0
    %90 = vmatpush1.bf16.msra.mxu0 %v87
    %91 = vmatprep.subr.bf16.mxu0 0
    %92 = vmatpush1.bf16.msra.mxu0 0
    %93 = vmatprep.subr.bf16.mxu0 0
    %94 = vmatpush1.bf16.msra.mxu0 0
    %95 = vmatprep.subr.bf16.mxu0 0
    %96 = vmatpush1.bf16.msra.mxu0 0
    %97 = vmatprep.subr.bf16.mxu0 0
    %98 = vmatpush1.bf16.msra.mxu0 0
    %99 = vmatprep.subr.bf16.mxu0 0
    %100 = vmatpush1.bf16.msra.mxu0 0
    %101 = vmatprep.subr.bf16.mxu0 0
    %102 = vmatpush1.bf16.msra.mxu0 0
    %103 = vmatprep.subr.bf16.mxu0 0
    %104 = vmatpush1.bf16.msra.mxu0 0
    %105 = vmatprep.subr.bf16.mxu0 0
    %106 = vmatpush1.bf16.msra.mxu0 0
    %107 = vmatprep.subr.bf16.mxu0 0
    %108 = vmatpush1.bf16.msra.mxu0 0
    %109 = vmatprep.subr.bf16.mxu0 0
    %110 = vmatpush1.bf16.msra.mxu0 0
    %111 = vmatprep.subr.bf16.mxu0 0
    %112 = vmatpush1.bf16.msra.mxu0 0
    %113 = vmatprep.subr.bf16.mxu0 0
    %114 = vmatpush1.bf16.msra.mxu0 0
    %115 = vmatprep.subr.bf16.mxu0 0
    %116 = vmatpush1.bf16.msra.mxu0 0
    %117 = vmatprep.subr.bf16.mxu0 0
    %118 = vmatpush1.bf16.msra.mxu0 0
    %119 = vmatprep.subr.bf16.mxu0 0
    %120 = vmatpush1.bf16.msra.mxu0 0
    %121 = vmatprep.mubr.bf16.mxu0 0
    %122 = vmatmul.mubr.bf16.gmra.mrb[0].mxu0 %v74
    %v123 = vpop.f32.mrb[0].mxu0
    %v124 = vadd.f32 0.0, %v123
    %v125 = vpop.f32.mrb[0].mxu0
    %v126 = vpop.f32.mrb[0].mxu0
    %v127 = vadd.f32 0.0, %v126
    %v128 = vpop.f32.mrb[0].mxu0
    %129 = vmatprep.mubr.bf16.mxu0 0
    %130 = vmatmul.mubr.bf16.gmra.mrb[0].mxu0 %v77
    %v131 = vpop.f32.mrb[0].mxu0
    %v132 = vadd.f32 0.0, %v131
    %v133 = vpop.f32.mrb[0].mxu0
    %v134 = vpop.f32.mrb[0].mxu0
    %v135 = vadd.f32 0.0, %v134
    %v136 = vpop.f32.mrb[0].mxu0
    %137 = vmatprep.mubr.bf16.mxu0 0
    %138 = vmatmul.mubr.bf16.gmra.mrb[0].mxu0 %v80
    %v139 = vpop.f32.mrb[0].mxu0
    %v140 = vadd.f32 0.0, %v139
    %v141 = vpop.f32.mrb[0].mxu0
    %v142 = vpop.f32.mrb[0].mxu0
    %v143 = vadd.f32 0.0, %v142
    %v144 = vpop.f32.mrb[0].mxu0
    %145 = vmatprep.mubr.bf16.mxu0 0
    %146 = vmatmul.mubr.bf16.gmra.mrb[0].mxu0 %v83
    %v147 = vpop.f32.mrb[0].mxu0
    %v148 = vadd.f32 0.0, %v147
    %v149 = vpop.f32.mrb[0].mxu0
    %v150 = vpop.f32.mrb[0].mxu0
    %v151 = vadd.f32 0.0, %v150
    %v152 = vpop.f32.mrb[0].mxu0
    %153 = vdwg.mxu0
    %v162 = vunpack.c.l.b16 %v34
    %v163 = vunpack.c.l.b16 %v35
    %v164 = vunpack.c.l.b16 %v36
    %v165 = vunpack.c.l.b16 %v37
    %v166 = vunpack.c.l.b16 %v38
    %v167 = vunpack.c.l.b16 %v39
    %v168 = vunpack.c.l.b16 %v40
    %v169 = vunpack.c.l.b16 %v41
    %v170 = vpack.c.b16 %v163, %v162
    %v171 = vpack.c.b16 %v165, %v164
    %v172 = vpack.c.b16 %v167, %v166
    %v173 = vpack.c.b16 %v169, %v168
    %v175 = vsel %vm72, %v170, 0
    %v178 = vsel %vm72, %v171, 0
    %v181 = vsel %vm72, %v172, 0
    %v184 = vsel %vm72, %v173, 0
    %v187 = vsel %vm85, %v42, 0
    %189 = vmatprep.subr.bf16.mxu0 0
    %190 = vmatpush1.bf16.msra.mxu0 %v187
    %191 = vmatprep.subr.bf16.mxu0 0
    %192 = vmatpush1.bf16.msra.mxu0 0
    %193 = vmatprep.subr.bf16.mxu0 0
    %194 = vmatpush1.bf16.msra.mxu0 0
    %195 = vmatprep.subr.bf16.mxu0 0
    %196 = vmatpush1.bf16.msra.mxu0 0
    %197 = vmatprep.subr.bf16.mxu0 0
    %198 = vmatpush1.bf16.msra.mxu0 0
    %199 = vmatprep.subr.bf16.mxu0 0
    %200 = vmatpush1.bf16.msra.mxu0 0
    %201 = vmatprep.subr.bf16.mxu0 0
    %202 = vmatpush1.bf16.msra.mxu0 0
    %203 = vmatprep.subr.bf16.mxu0 0
    %204 = vmatpush1.bf16.msra.mxu0 0
    %205 = vmatprep.subr.bf16.mxu0 0
    %206 = vmatpush1.bf16.msra.mxu0 0
    %207 = vmatprep.subr.bf16.mxu0 0
    %208 = vmatpush1.bf16.msra.mxu0 0
    %209 = vmatprep.subr.bf16.mxu0 0
    %210 = vmatpush1.bf16.msra.mxu0 0
    %211 = vmatprep.subr.bf16.mxu0 0
    %212 = vmatpush1.bf16.msra.mxu0 0
    %213 = vmatprep.subr.bf16.mxu0 0
    %214 = vmatpush1.bf16.msra.mxu0 0
    %215 = vmatprep.subr.bf16.mxu0 0
    %216 = vmatpush1.bf16.msra.mxu0 0
    %217 = vmatprep.subr.bf16.mxu0 0
    %218 = vmatpush1.bf16.msra.mxu0 0
    %219 = vmatprep.subr.bf16.mxu0 0
    %220 = vmatpush1.bf16.msra.mxu0 0
    %221 = vmatprep.mubr.bf16.mxu0 0
    %222 = vmatmul.mubr.bf16.gmra.mrb[0].mxu0 %v175
    %v223 = vpop.f32.mrb[0].mxu0
    %v224 = vadd.f32 %v124, %v223
    %v225 = vpop.f32.mrb[0].mxu0
    %v226 = vpop.f32.mrb[0].mxu0
    %v227 = vadd.f32 %v127, %v226
    %v228 = vpop.f32.mrb[0].mxu0
    %229 = vmatprep.mubr.bf16.mxu0 0
    %230 = vmatmul.mubr.bf16.gmra.mrb[0].mxu0 %v178
    %v231 = vpop.f32.mrb[0].mxu0
    %v232 = vadd.f32 %v132, %v231
    %v233 = vpop.f32.mrb[0].mxu0
    %v234 = vpop.f32.mrb[0].mxu0
    %v235 = vadd.f32 %v135, %v234
    %v236 = vpop.f32.mrb[0].mxu0
    %237 = vmatprep.mubr.bf16.mxu0 0
    %238 = vmatmul.mubr.bf16.gmra.mrb[0].mxu0 %v181
    %v239 = vpop.f32.mrb[0].mxu0
    %v240 = vadd.f32 %v140, %v239
    %v241 = vpop.f32.mrb[0].mxu0
    %v242 = vpop.f32.mrb[0].mxu0
    %v243 = vadd.f32 %v143, %v242
    %v244 = vpop.f32.mrb[0].mxu0
    %245 = vmatprep.mubr.bf16.mxu0 0
    %246 = vmatmul.mubr.bf16.gmra.mrb[0].mxu0 %v184
    %v247 = vpop.f32.mrb[0].mxu0
    %v248 = vadd.f32 %v148, %v247
    %v249 = vpop.f32.mrb[0].mxu0
    %v250 = vpop.f32.mrb[0].mxu0
    %v251 = vadd.f32 %v151, %v250
    %v252 = vpop.f32.mrb[0].mxu0
    %253 = vdwg.mxu0
    %v254 = vld [vmem:[%s4] sm:$0xff]
    %v255 = vld [vmem:[%s4 + $0x8] sm:$0xff]
    %v256 = vld [vmem:[%s4 + $0x10] sm:$0xff]
    %v257 = vld [vmem:[%s4 + $0x18] sm:$0xff]
    %v258 = vld [vmem:[%s4 + $0x20] sm:$0xff]
    %v259 = vld [vmem:[%s4 + $0x28] sm:$0xff]
    %v260 = vld [vmem:[%s4 + $0x30] sm:$0xff]
    %v261 = vld [vmem:[%s4 + $0x38] sm:$0xff]
    %263 = vset.pattern.permute.xlu0 0
    %264 = vperm.xlu0 %263, %v254
    %v265 = vpop.permute.xlu0 %264
    %268 = vset.pattern.permute.xlu0 0
    %269 = vperm.xlu0 %268, %v255
    %v270 = vpop.permute.xlu0 %269
    %273 = vset.pattern.permute.xlu0 0
    %274 = vperm.xlu0 %273, %v256
    %v275 = vpop.permute.xlu0 %274
    %278 = vset.pattern.permute.xlu0 0
    %279 = vperm.xlu0 %278, %v257
    %v280 = vpop.permute.xlu0 %279
    %283 = vset.pattern.permute.xlu0 0
    %284 = vperm.xlu0 %283, %v258
    %v285 = vpop.permute.xlu0 %284
    %288 = vset.pattern.permute.xlu0 0
    %289 = vperm.xlu0 %288, %v259
    %v290 = vpop.permute.xlu0 %289
    %293 = vset.pattern.permute.xlu0 0
    %294 = vperm.xlu0 %293, %v260
    %v295 = vpop.permute.xlu0 %294
    %298 = vset.pattern.permute.xlu0 0
    %299 = vperm.xlu0 %298, %v261
    %v300 = vpop.permute.xlu0 %299
    %v302 = vadd.f32 %v224, %v265
    %v303 = vadd.f32 %v227, %v270
    %v304 = vadd.f32 %v232, %v275
    %v305 = vadd.f32 %v235, %v280
    %v306 = vadd.f32 %v240, %v285
    %v307 = vadd.f32 %v243, %v290
    %v308 = vadd.f32 %v248, %v295
    %v309 = vadd.f32 %v251, %v300
    %vm310 = vcmp.gt.f32.partialorder %v302, 0.0
    %vm311 = vcmp.gt.f32.partialorder %v303, 0.0
    %vm312 = vcmp.gt.f32.partialorder %v304, 0.0
    %vm313 = vcmp.gt.f32.partialorder %v305, 0.0
    %vm314 = vcmp.gt.f32.partialorder %v306, 0.0
    %vm315 = vcmp.gt.f32.partialorder %v307, 0.0
    %vm316 = vcmp.gt.f32.partialorder %v308, 0.0
    %vm317 = vcmp.gt.f32.partialorder %v309, 0.0
    %v318 = vmul.f32 %v302, 0.1
    %v319 = vmul.f32 %v303, 0.1
    %v320 = vmul.f32 %v304, 0.1
    %v321 = vmul.f32 %v305, 0.1
    %v322 = vmul.f32 %v306, 0.1
    %v323 = vmul.f32 %v307, 0.1
    %v324 = vmul.f32 %v308, 0.1
    %v325 = vmul.f32 %v309, 0.1
    %v326 = vsel %vm310, %v302, %v318
    %v327 = vsel %vm311, %v303, %v319
    %v328 = vsel %vm312, %v304, %v320
    %v329 = vsel %vm313, %v305, %v321
    %v330 = vsel %vm314, %v306, %v322
    %v331 = vsel %vm315, %v307, %v323
    %v332 = vsel %vm316, %v308, %v324
    %v333 = vsel %vm317, %v309, %v325
    %v334 = vpack.c.bf16 %v327, %v326
    %v335 = vpack.c.bf16 %v329, %v328
    %v336 = vpack.c.bf16 %v331, %v330
    %v337 = vpack.c.bf16 %v333, %v332
    %v338 = vld [vmem:[%s5] sm:$0xf]
    %v339 = vld [vmem:[%s5 + $0x4] sm:$0xf]
    %v340 = vld [vmem:[%s5 + $0x8] sm:$0xf]
    %v341 = vld [vmem:[%s5 + $0xc] sm:$0xf]
    %v342 = vld [vmem:[%s5 + $0x10] sm:$0xf]
    %v343 = vld [vmem:[%s5 + $0x14] sm:$0xf]
    %v344 = vld [vmem:[%s5 + $0x18] sm:$0xf]
    %v345 = vld [vmem:[%s5 + $0x1c] sm:$0xf]
    %v346 = vld [vmem:[%s6] sm:$0xff]
    %v347 = vld [vmem:[%s6 + $0x8] sm:$0xff]
    %v348 = vld [vmem:[%s6 + $0x10] sm:$0xff]
    %v349 = vld [vmem:[%s6 + $0x18] sm:$0xff]
    %v350 = vld [vmem:[%s6 + $0x20] sm:$0xff]
    %v351 = vld [vmem:[%s6 + $0x28] sm:$0xff]
    %v352 = vld [vmem:[%s6 + $0x30] sm:$0xff]
    %v353 = vld [vmem:[%s6 + $0x38] sm:$0xff]
    %355 = vset.pattern.permute.xlu0 0
    %356 = vperm.xlu0 %355, %v346
    %v357 = vpop.permute.xlu0 %356
    %360 = vset.pattern.permute.xlu0 0
    %361 = vperm.xlu0 %360, %v347
    %v362 = vpop.permute.xlu0 %361
    %365 = vset.pattern.permute.xlu0 0
    %366 = vperm.xlu0 %365, %v348
    %v367 = vpop.permute.xlu0 %366
    %370 = vset.pattern.permute.xlu0 0
    %371 = vperm.xlu0 %370, %v349
    %v372 = vpop.permute.xlu0 %371
    %375 = vset.pattern.permute.xlu0 0
    %376 = vperm.xlu0 %375, %v350
    %v377 = vpop.permute.xlu0 %376
    %380 = vset.pattern.permute.xlu0 0
    %381 = vperm.xlu0 %380, %v351
    %v382 = vpop.permute.xlu0 %381
    %385 = vset.pattern.permute.xlu0 0
    %386 = vperm.xlu0 %385, %v352
    %v387 = vpop.permute.xlu0 %386
    %390 = vset.pattern.permute.xlu0 0
    %391 = vperm.xlu0 %390, %v353
    %v392 = vpop.permute.xlu0 %391
    %v402 = vunpack.c.l.b16 %v338
    %v403 = vunpack.c.l.b16 %v339
    %v404 = vunpack.c.l.b16 %v340
    %v405 = vunpack.c.l.b16 %v341
    %v406 = vunpack.c.l.b16 %v342
    %v407 = vunpack.c.l.b16 %v343
    %v408 = vunpack.c.l.b16 %v344
    %v409 = vunpack.c.l.b16 %v345
    %v410 = vpack.c.b16 %v403, %v402
    %v411 = vpack.c.b16 %v405, %v404
    %v412 = vpack.c.b16 %v407, %v406
    %v413 = vpack.c.b16 %v409, %v408
    %vm414 = vcmask 523264
    %v416 = vsel %vm414, %v410, 0
    %v419 = vsel %vm414, %v411, 0
    %v422 = vsel %vm414, %v412, 0
    %v425 = vsel %vm414, %v413, 0
    %427 = vmatprep.subr.bf16.mxu0 0
    %428 = vmatpush1.bf16.msra.mxu0 %v334
    %429 = vmatprep.subr.bf16.mxu0 0
    %430 = vmatpush1.bf16.msra.mxu0 %v335
    %431 = vmatprep.subr.bf16.mxu0 0
    %432 = vmatpush1.bf16.msra.mxu0 %v336
    %433 = vmatprep.subr.bf16.mxu0 0
    %434 = vmatpush1.bf16.msra.mxu0 %v337
    %435 = vmatprep.subr.bf16.mxu0 0
    %436 = vmatpush1.bf16.msra.mxu0 0
    %437 = vmatprep.subr.bf16.mxu0 0
    %438 = vmatpush1.bf16.msra.mxu0 0
    %439 = vmatprep.subr.bf16.mxu0 0
    %440 = vmatpush1.bf16.msra.mxu0 0
    %441 = vmatprep.subr.bf16.mxu0 0
    %442 = vmatpush1.bf16.msra.mxu0 0
    %443 = vmatprep.subr.bf16.mxu0 0
    %444 = vmatpush1.bf16.msra.mxu0 0
    %445 = vmatprep.subr.bf16.mxu0 0
    %446 = vmatpush1.bf16.msra.mxu0 0
    %447 = vmatprep.subr.bf16.mxu0 0
    %448 = vmatpush1.bf16.msra.mxu0 0
    %449 = vmatprep.subr.bf16.mxu0 0
    %450 = vmatpush1.bf16.msra.mxu0 0
    %451 = vmatprep.subr.bf16.mxu0 0
    %452 = vmatpush1.bf16.msra.mxu0 0
    %453 = vmatprep.subr.bf16.mxu0 0
    %454 = vmatpush1.bf16.msra.mxu0 0
    %455 = vmatprep.subr.bf16.mxu0 0
    %456 = vmatpush1.bf16.msra.mxu0 0
    %457 = vmatprep.subr.bf16.mxu0 0
    %458 = vmatpush1.bf16.msra.mxu0 0
    %459 = vmatprep.mubr.bf16.mxu0 0
    %460 = vmatmul.mubr.bf16.gmra.mrb[0].mxu0 %v416
    %v461 = vpop.f32.mrb[0].mxu0
    %v462 = vadd.f32 %v357, %v461
    %v463 = vpop.f32.mrb[0].mxu0
    %v464 = vpop.f32.mrb[0].mxu0
    %v465 = vadd.f32 %v362, %v464
    %v466 = vpop.f32.mrb[0].mxu0
    %467 = vmatprep.mubr.bf16.mxu0 0
    %468 = vmatmul.mubr.bf16.gmra.mrb[0].mxu0 %v419
    %v469 = vpop.f32.mrb[0].mxu0
    %v470 = vadd.f32 %v367, %v469
    %v471 = vpop.f32.mrb[0].mxu0
    %v472 = vpop.f32.mrb[0].mxu0
    %v473 = vadd.f32 %v372, %v472
    %v474 = vpop.f32.mrb[0].mxu0
    %475 = vmatprep.mubr.bf16.mxu0 0
    %476 = vmatmul.mubr.bf16.gmra.mrb[0].mxu0 %v422
    %v477 = vpop.f32.mrb[0].mxu0
    %v478 = vadd.f32 %v377, %v477
    %v479 = vpop.f32.mrb[0].mxu0
    %v480 = vpop.f32.mrb[0].mxu0
    %v481 = vadd.f32 %v382, %v480
    %v482 = vpop.f32.mrb[0].mxu0
    %483 = vmatprep.mubr.bf16.mxu0 0
    %484 = vmatmul.mubr.bf16.gmra.mrb[0].mxu0 %v425
    %v485 = vpop.f32.mrb[0].mxu0
    %v486 = vadd.f32 %v387, %v485
    %v487 = vpop.f32.mrb[0].mxu0
    %v488 = vpop.f32.mrb[0].mxu0
    %v489 = vadd.f32 %v392, %v488
    %v490 = vpop.f32.mrb[0].mxu0
    %491 = vdwg.mxu0
    %vm492 = vcmp.gt.f32.partialorder %v462, 0.0
    %vm493 = vcmp.gt.f32.partialorder %v465, 0.0
    %vm494 = vcmp.gt.f32.partialorder %v470, 0.0
    %vm495 = vcmp.gt.f32.partialorder %v473, 0.0
    %vm496 = vcmp.gt.f32.partialorder %v478, 0.0
    %vm497 = vcmp.gt.f32.partialorder %v481, 0.0
    %vm498 = vcmp.gt.f32.partialorder %v486, 0.0
    %vm499 = vcmp.gt.f32.partialorder %v489, 0.0
    %v500 = vmul.f32 %v462, 0.1
    %v501 = vmul.f32 %v465, 0.1
    %v502 = vmul.f32 %v470, 0.1
    %v503 = vmul.f32 %v473, 0.1
    %v504 = vmul.f32 %v478, 0.1
    %v505 = vmul.f32 %v481, 0.1
    %v506 = vmul.f32 %v486, 0.1
    %v507 = vmul.f32 %v489, 0.1
    %v508 = vsel %vm492, %v462, %v500
    %v509 = vsel %vm493, %v465, %v501
    %v510 = vsel %vm494, %v470, %v502
    %v511 = vsel %vm495, %v473, %v503
    %v512 = vsel %vm496, %v478, %v504
    %v513 = vsel %vm497, %v481, %v505
    %v514 = vsel %vm498, %v486, %v506
    %v515 = vsel %vm499, %v489, %v507
    %v516 = vpack.c.bf16 %v509, %v508
    %v517 = vpack.c.bf16 %v511, %v510
    %v518 = vpack.c.bf16 %v513, %v512
    %v519 = vpack.c.bf16 %v515, %v514
    %v520 = vld [vmem:[%s7] sm:$0xf]
    %v521 = vld [vmem:[%s7 + $0x4] sm:$0xf]
    %v522 = vld [vmem:[%s8] sm:$0xff]
    %v523 = vld [vmem:[%s8 + $0x8] sm:$0xff]
    %525 = vset.pattern.permute.xlu0 0
    %526 = vperm.xlu0 %525, %v522
    %v527 = vpop.permute.xlu0 %526
    %530 = vset.pattern.permute.xlu0 0
    %531 = vperm.xlu0 %530, %v523
    %v532 = vpop.permute.xlu0 %531
    %v536 = vunpack.c.l.b16 %v520
    %v537 = vunpack.c.l.b16 %v521
    %v538 = vpack.c.b16 %v537, %v536
    %v540 = vsel %vm414, %v538, 0
    %542 = vmatprep.subr.bf16.mxu0 0
    %543 = vmatpush1.bf16.msra.mxu0 %v516
    %544 = vmatprep.subr.bf16.mxu0 0
    %545 = vmatpush1.bf16.msra.mxu0 %v517
    %546 = vmatprep.subr.bf16.mxu0 0
    %547 = vmatpush1.bf16.msra.mxu0 %v518
    %548 = vmatprep.subr.bf16.mxu0 0
    %549 = vmatpush1.bf16.msra.mxu0 %v519
    %550 = vmatprep.subr.bf16.mxu0 0
    %551 = vmatpush1.bf16.msra.mxu0 0
    %552 = vmatprep.subr.bf16.mxu0 0
    %553 = vmatpush1.bf16.msra.mxu0 0
    %554 = vmatprep.subr.bf16.mxu0 0
    %555 = vmatpush1.bf16.msra.mxu0 0
    %556 = vmatprep.subr.bf16.mxu0 0
    %557 = vmatpush1.bf16.msra.mxu0 0
    %558 = vmatprep.subr.bf16.mxu0 0
    %559 = vmatpush1.bf16.msra.mxu0 0
    %560 = vmatprep.subr.bf16.mxu0 0
    %561 = vmatpush1.bf16.msra.mxu0 0
    %562 = vmatprep.subr.bf16.mxu0 0
    %563 = vmatpush1.bf16.msra.mxu0 0
    %564 = vmatprep.subr.bf16.mxu0 0
    %565 = vmatpush1.bf16.msra.mxu0 0
    %566 = vmatprep.subr.bf16.mxu0 0
    %567 = vmatpush1.bf16.msra.mxu0 0
    %568 = vmatprep.subr.bf16.mxu0 0
    %569 = vmatpush1.bf16.msra.mxu0 0
    %570 = vmatprep.subr.bf16.mxu0 0
    %571 = vmatpush1.bf16.msra.mxu0 0
    %572 = vmatprep.subr.bf16.mxu0 0
    %573 = vmatpush1.bf16.msra.mxu0 0
    %574 = vmatprep.mubr.bf16.mxu0 0
    %575 = vmatmul.mubr.bf16.gmra.mrb[0].mxu0 %v540
    %v576 = vpop.f32.mrb[0].mxu0
    %v577 = vadd.f32 %v527, %v576
    %v578 = vpop.f32.mrb[0].mxu0
    %v579 = vpop.f32.mrb[0].mxu0
    %v580 = vadd.f32 %v532, %v579
    %v581 = vpop.f32.mrb[0].mxu0
    %582 = vdwg.mxu0
    %v583 = vmul.f32 %v580, 1.442695
    %v584 = vpow.pop %v583
    %585 = vst [vmem:[#allocation2] sm:$0xff] %v577
    %586 = vst [vmem:[#allocation2 + $0x8] sm:$0xff] %v584
    // Predicated region
    $region38: #{tpu_custom_call.1} parent=1 // pred_check
      _
    $region39: #{tpu_custom_call.1} parent=1 // pred_check_branch
      %588 = sbr.rel (0) target = $region41
    $region40: #{tpu_custom_call.1} parent=1 // pred_region
      %s590 = ssub.s32 256, 256
      %591 = vsyncadd [#allocation3], %s590
      %s592 = sshll.u32 [#allocation2], 4
      %s593 = int_to_ptr.vmem [resolvable:$true] %s592
      %598 = dma.vmem_to_hbm [thread:$0]  %s593, 256, %s9, [#allocation3], 128, 128, 8
    $region41: #{tpu_custom_call.1} parent=1 // pred_fallthru
      _
    // Predicated region
    $region42: #{tpu_custom_call.1} parent=1 // pred_check
      _
    $region43: #{tpu_custom_call.1} parent=1 // pred_check_branch
      %600 = sbr.rel (0) target = $region45
    $region44: #{tpu_custom_call.1} parent=1 // pred_region
      %601 = dma.done [#allocation3], 256
    $region45: #{tpu_custom_call.1} parent=1 // pred_fallthru
      _
    %602 = vsyncpa [#allocation3], 1

</llo_original>
